<compile_context>
chip_gen: v7x
topology: tpu7x:2x2x1
jax: 0.10.0
libtpu: 0.0.40
codegen_flags: <defaults>
</compile_context>

<pallas_src>
import functools

import jax
import jax.numpy as jnp
from jax import lax
from jax.experimental import pallas as pl
from jax.experimental.pallas import tpu as pltpu


def _round_up(x, m):
    return ((x + m - 1) // m) * m


def _vmem_capacity_bytes():
    """Physical VMEM of the local TPU generation, with a safe fallback."""
    try:
        info = pltpu.get_tpu_info()
        for name in ("vmem_capacity_bytes", "vmem_size_bytes", "vmem_bytes"):
            cap = getattr(info, name, None)
            if cap:
                return int(cap)
    except Exception:
        pass
    return 64 * 1024 * 1024  # v7x per-core size: conservative for all gens


# ---------------------------------------------------------------------------
# Kernels
# ---------------------------------------------------------------------------
def _csra_single_kernel(x_ref, w_ref, o_ref, *, T, lam, S, block_b):
    """Whole spatial extent in VMEM; block_b batch elements per grid step.

    x_ref: (Bb, C, S)   native-layout activations
    w_ref: (N_pad, C)   1x1-conv weight, pre-scaled by 1/||w_class||
    o_ref: (Bb, N_pad, 1) f32 logits
    """
    w = w_ref[...]
    inv_s = 1.0 / float(S)
    for b in range(block_b):                                     # tiny static unroll
        score = jnp.dot(w, x_ref[b], preferred_element_type=jnp.float32)  # [N_pad, S]
        base = jnp.sum(score, axis=1, keepdims=True) * inv_s
        if T == 99:
            att = jnp.max(score, axis=1, keepdims=True)
        else:
            z = score * float(T)
            m = jnp.max(z, axis=1, keepdims=True)
            e = jnp.exp(z - m)                                   # [N_pad, S]
            att = (jnp.sum(score * e, axis=1, keepdims=True)
                   / jnp.sum(e, axis=1, keepdims=True))
        o_ref[b] = (base + float(lam) * att).astype(o_ref.dtype)


def _csra_tiled_kernel(x_ref, w_ref, o_ref,
                       sum_acc, m_acc, l_acc, wsum_acc,
                       *, T, lam, S, tail, needs_mask, block_s):
    """Spatially tiled online-softmax path (one batch element per grid row).

    x_ref: (1, C, tS); w_ref: (N_pad, C) pre-scaled; o_ref: (1, N_pad, 1)
    scratch: (N_pad, 1) f32 running accumulators, persist across the S axis.
    """
    s_idx = pl.program_id(1)
    n_s = pl.num_programs(1)

    @pl.when(s_idx == 0)
    def _init():
        sum_acc[...] = jnp.zeros_like(sum_acc)
        m_acc[...] = jnp.full(m_acc.shape, -jnp.inf, dtype=m_acc.dtype)
        l_acc[...] = jnp.zeros_like(l_acc)
        wsum_acc[...] = jnp.zeros_like(wsum_acc)

    # 1x1-conv head: the weight already carries 1/||w_class||.
    score_raw = jnp.dot(w_ref[...], x_ref[0],
                        preferred_element_type=jnp.float32)      # [N_pad, tS] f32

    def accumulate(score, neg):
        # score: invalid columns already zeroed; neg: (1, tS) 0/-inf row or None.
        sum_acc[...] += jnp.sum(score, axis=1, keepdims=True)
        if T == 99:
            vals = score if neg is None else score + neg
            m_acc[...] = jnp.maximum(m_acc[...],
                                     jnp.max(vals, axis=1, keepdims=True))
        else:
            z = score * float(T)
            if neg is not None:
                z = z + neg                    # masked cols -> -inf -> exp == 0
            m_prev = m_acc[...]
            m_new = jnp.maximum(m_prev, jnp.max(z, axis=1, keepdims=True))
            alpha = jnp.exp(m_prev - m_new)    # == 0 on the very first tile
            e = jnp.exp(z - m_new)             # [N_pad, tS]
            l_acc[...] = alpha * l_acc[...] + jnp.sum(e, axis=1, keepdims=True)
            wsum_acc[...] = (alpha * wsum_acc[...]
                            + jnp.sum(score * e, axis=1, keepdims=True))
            m_acc[...] = m_new

    if needs_mask:
        # Only the last spatial tile is ragged; full tiles skip all mask work.
        @pl.when(s_idx < n_s - 1)
        def _full_tile():
            accumulate(score_raw, None)

        @pl.when(s_idx == n_s - 1)
        def _ragged_tile():
            col = lax.broadcasted_iota(jnp.int32, (1, block_s), 1)
            valid = col < tail                          # (1, tS) lane row
            score = jnp.where(valid, score_raw, 0.0)    # zero for the sums
            neg = jnp.where(valid, 0.0, -jnp.inf)       # -inf for max / exp
            accumulate(score, neg)
    else:
        accumulate(score_raw, None)

    @pl.when(s_idx == n_s - 1)
    def _finalize():
        base = sum_acc[...] * (1.0 / float(S))          # mean over S
        if T == 99:
            att = m_acc[...]
        else:
            att = wsum_acc[...] / l_acc[...]            # one tiny [N_pad,1] divide
        o_ref[0] = (base + float(lam) * att).astype(o_ref.dtype)


# ---------------------------------------------------------------------------
# Tiling heuristics
# ---------------------------------------------------------------------------
def _pick_block_s(S, C, x_itemsize, n_pad, budget_bytes):
    """Prefer the full spatial extent (contiguous DMA); otherwise the largest
    128-multiple whose double-buffered x tile + f32 intermediates fit budget."""
    per_col = 2 * C * x_itemsize + 6 * n_pad * 4
    if S * per_col <= budget_bytes:
        return S
    min_ts = 256 if x_itemsize <= 2 else 128   # keep DMA rows >= ~1 KiB (v5e)
    ts = (budget_bytes // per_col) // 128 * 128
    ts = max(min_ts, min(ts, 8192))
    return min(ts, S)


def _pick_block_b(B, C, S, x_itemsize, n_pad, budget_bytes):
    """Batch block for the single-shot path: largest divisor of B that fits the
    VMEM budget, keeps >= 2 parallel grid steps when B >= 2 (v7x megacore) and
    bounds the unrolled inner loop."""
    per_b = 2 * C * S * x_itemsize + 4 * n_pad * _round_up(S, 128) * 4
    fit = max(1, budget_bytes // per_b)
    cap = min(fit, 8, B if B < 2 else max(1, B // 2))
    bb = 1
    for d in range(1, B + 1):
        if B % d == 0 and d <= cap:
            bb = d
    return bb


# ---------------------------------------------------------------------------
# Wrapper
# ---------------------------------------------------------------------------
def csra_forward(x_nchw, weight, T, lam, *, block_s=None, block_b=None):
    """x_nchw: [B, C, H, W] (f32 or bf16); weight: [num_classes, C, 1, 1]."""
    B, C, H, W = x_nchw.shape
    N = weight.shape[0]
    S = H * W
    in_dtype = x_nchw.dtype
    itemsize = jnp.dtype(in_dtype).itemsize

    # Free reshape only: x stays in its native channel-major layout & dtype.
    x = x_nchw.reshape(B, C, S)

    # Fold the per-class 1/||w|| into the weight (f32 math, then cast to the
    # activation dtype); pad the class dim to a sublane-packing multiple.
    w2d = weight.reshape(N, C).astype(jnp.float32)
    inv_norm = 1.0 / jnp.sqrt(jnp.sum(w2d * w2d, axis=1, keepdims=True))
    w_scaled = (w2d * inv_norm).astype(in_dtype)
    n_pad = _round_up(N, 16)
    w_pad = jnp.zeros((n_pad, C), dtype=in_dtype).at[:N].set(w_scaled)

    # Per-generation VMEM budget / scoped limit.
    phys_vmem = _vmem_capacity_bytes()
    x_budget = int(0.4 * phys_vmem)

    if block_s is None:
        block_s = _pick_block_s(S, C, itemsize, n_pad, x_budget)
    block_s = min(int(block_s), S)
    if block_s < S:
        block_s = max(128, (block_s // 128) * 128)     # partial tiles: lane-aligned
    grid_s = pl.cdiv(S, block_s)

    cost = pl.CostEstimate(
        flops=2 * B * n_pad * C * S + 6 * B * n_pad * S,
        transcendentals=0 if T == 99 else B * n_pad * S,
        bytes_accessed=B * C * S * itemsize + n_pad * C * itemsize + B * n_pad * 4)

    if grid_s == 1:
        # ---- Single-shot path: whole spatial extent per step; block the batch.
        if block_b is None:
            block_b = _pick_block_b(B, C, S, itemsize, n_pad, x_budget)
        block_b = max(1, int(block_b))
        while B % block_b != 0:                        # must evenly divide B
            block_b -= 1
        grid_b = B // block_b

        needed = (2 * block_b * C * S * itemsize       # x double-buffer
                  + 2 * n_pad * C * itemsize           # weight buffers
                  + 4 * n_pad * _round_up(S, 128) * 4  # f32 intermediates
                  + 2 * block_b * n_pad * 128 * 4)     # lane-padded out buffer
        vmem_limit = int(min(0.9 * phys_vmem,
                             max(32 * 1024 * 1024, 2 * needed + (8 << 20))))

        kernel = functools.partial(_csra_single_kernel, T=T, lam=float(lam),
                                   S=S, block_b=block_b)
        out = pl.pallas_call(
            kernel,
            out_shape=jax.ShapeDtypeStruct((B, n_pad, 1), jnp.float32),
            grid=(grid_b,),
            in_specs=[
                pl.BlockSpec((block_b, C, S), lambda i: (i, 0, 0)),
                pl.BlockSpec((n_pad, C), lambda i: (0, 0)),      # fetched once
            ],
            out_specs=pl.BlockSpec((block_b, n_pad, 1), lambda i: (i, 0, 0)),
            compiler_params=pltpu.CompilerParams(
                dimension_semantics=("parallel",),
                vmem_limit_bytes=vmem_limit),
            cost_estimate=cost,
        )(x, w_pad)
    else:
        # ---- Spatially tiled path: online softmax with VMEM accumulators.
        needs_mask = (S % block_s) != 0
        tail = S - (grid_s - 1) * block_s              # valid cols in last tile

        needed = (2 * C * block_s * itemsize
                  + 2 * n_pad * C * itemsize
                  + 6 * n_pad * block_s * 4
                  + 2 * n_pad * 128 * 4)
        vmem_limit = int(min(0.9 * phys_vmem,
                             max(32 * 1024 * 1024, 2 * needed + (8 << 20))))

        kernel = functools.partial(_csra_tiled_kernel, T=T, lam=float(lam),
                                   S=S, tail=tail, needs_mask=needs_mask,
                                   block_s=block_s)
        out = pl.pallas_call(
            kernel,
            out_shape=jax.ShapeDtypeStruct((B, n_pad, 1), jnp.float32),
            grid=(B, grid_s),
            in_specs=[
                pl.BlockSpec((1, C, block_s), lambda b, s: (b, 0, s)),
                pl.BlockSpec((n_pad, C), lambda b, s: (0, 0)),   # fetched once
            ],
            out_specs=pl.BlockSpec((1, n_pad, 1), lambda b, s: (b, 0, 0)),
            scratch_shapes=[
                pltpu.VMEM((n_pad, 1), jnp.float32),  # running spatial sum
                pltpu.VMEM((n_pad, 1), jnp.float32),  # running max
                pltpu.VMEM((n_pad, 1), jnp.float32),  # running exp-sum
                pltpu.VMEM((n_pad, 1), jnp.float32),  # running weighted exp-sum
            ],
            compiler_params=pltpu.CompilerParams(
                dimension_semantics=("parallel", "arbitrary"),
                vmem_limit_bytes=vmem_limit),
            cost_estimate=cost,
        )(x, w_pad)

    return out[:, :N, 0]


def csra_reference(x_nchw, weight, T, lam):
    """Pure-JAX reference mirroring the PyTorch forward (f32 math)."""
    B, C, H, W = x_nchw.shape
    N = weight.shape[0]
    w2d = weight.reshape(N, C).astype(jnp.float32)
    norm = jnp.linalg.norm(w2d, axis=1).reshape(1, N, 1)
    score = jnp.einsum("bchw,nc->bnhw", x_nchw.astype(jnp.float32),
                       w2d).reshape(B, N, H * W) / norm
    base = jnp.mean(score, axis=2)
    if T == 99:
        att = jnp.max(score, axis=2)
    else:
        p = jax.nn.softmax(score * T, axis=2)
        att = jnp.sum(score * p, axis=2)
    return base + lam * att


if __name__ == "__main__":
    key = jax.random.PRNGKey(0)
    kx, kw, kx2, kw2, kx3 = jax.random.split(key, 5)

    # --- Tests 1 & 2: f32, aligned spatial (S=256) -> single-shot path.
    B, C, H, W, N = 2, 4, 16, 16, 8
    x = jax.random.normal(kx, (B, C, H, W), dtype=jnp.float32)
    weight = jax.random.normal(kw, (N, C, 1, 1), dtype=jnp.float32) * 0.1

    out = jax.block_until_ready(csra_forward(x, weight, 2.0, 0.1))
    ref = csra_reference(x, weight, 2.0, 0.1)
    assert out.shape == (B, N)
    assert jnp.allclose(out, ref, atol=1e-4, rtol=1e-4)

    out_max = jax.block_until_ready(csra_forward(x, weight, 99, 0.1))
    ref_max = csra_reference(x, weight, 99, 0.1)
    assert jnp.allclose(out_max, ref_max, atol=1e-4, rtol=1e-4)

    # --- Test 3: ragged spatial (S=196) with forced tiling (tS=128): exercises
    #     the online-softmax accumulators, last-tile-only mask, class padding.
    B3, C3, H3, W3, N3 = 2, 4, 14, 14, 10
    x3 = jax.random.normal(kx2, (B3, C3, H3, W3), dtype=jnp.float32)
    w3 = jax.random.normal(kw2, (N3, C3, 1, 1), dtype=jnp.float32) * 0.1

    out3 = jax.block_until_ready(csra_forward(x3, w3, 3.0, 0.2, block_s=128))
    ref3 = csra_reference(x3, w3, 3.0, 0.2)
    assert out3.shape == (B3, N3)
    assert jnp.allclose(out3, ref3, atol=1e-4, rtol=1e-4)

    out3m = jax.block_until_ready(csra_forward(x3, w3, 99, 0.2, block_s=128))
    ref3m = csra_reference(x3, w3, 99, 0.2)
    assert jnp.allclose(out3m, ref3m, atol=1e-4, rtol=1e-4)

    # --- Test 4: batch-blocked single-shot path (B=4, block_b=2 -> 2 parallel
    #     grid steps, 2 batch elements per step).
    B4 = 4
    x4 = jax.random.normal(kx3, (B4, C3, H3, W3), dtype=jnp.float32)
    out4 = jax.block_until_ready(csra_forward(x4, w3, 2.5, 0.3, block_b=2))
    ref4 = csra_reference(x4, w3, 2.5, 0.3)
    assert out4.shape == (B4, N3)
    assert jnp.allclose(out4, ref4, atol=1e-4, rtol=1e-4)

    out4m = jax.block_until_ready(csra_forward(x4, w3, 99, 0.3, block_b=2))
    ref4m = csra_reference(x4, w3, 99, 0.3)
    assert jnp.allclose(out4m, ref4m, atol=1e-4, rtol=1e-4)

    # --- Test 5: bf16 activations streamed natively (bf16 MXU, f32 accum).
    out_bf16 = jax.block_until_ready(
        csra_forward(x.astype(jnp.bfloat16), weight, 2.0, 0.1))
    assert jnp.allclose(out_bf16, ref, atol=5e-2, rtol=5e-2)

    print("KERNEL_OK")
</pallas_src>

<mosaic_0001>
module attributes {stable_mosaic.version = 11 : i64} {
  func.func @_csra_single_kernel(%arg0: i32, %arg1: memref<1x4x256xf32, #tpu.memory_space<vmem>>, %arg2: memref<16x4xf32, #tpu.memory_space<vmem>>, %arg3: memref<1x16x1xf32, #tpu.memory_space<vmem>>) attributes {dimension_semantics = [#tpu.dimension_semantics<parallel>], iteration_bounds = array<i64: 2>, scalar_prefetch = 0 : i64, scratch_operands = 0 : i64, tpu.core_type = #tpu.core_type<tc>, window_params = [{transform_indices = @transform_0, window_bounds = array<i64: 1, 4, 256>}, {pipeline_mode = #tpu.pipeline_mode<synchronous>, transform_indices = @transform_1, window_bounds = array<i64: 16, 4>}, {transform_indices = @transform_2, window_bounds = array<i64: 1, 16, 1>}]} {
    %c0 = arith.constant 0 : index
    %c0_0 = arith.constant 0 : index
    %0 = vector.load %arg2[%c0, %c0_0] : memref<16x4xf32, #tpu.memory_space<vmem>>, vector<16x4xf32>
    %c0_1 = arith.constant 0 : index
    %c0_2 = arith.constant 0 : index
    %c0_3 = arith.constant 0 : index
    %1 = vector.load %arg1[%c0_1, %c0_2, %c0_3] : memref<1x4x256xf32, #tpu.memory_space<vmem>>, vector<1x4x256xf32>
    %2 = vector.shape_cast %1 : vector<1x4x256xf32> to vector<4x256xf32>
    %cst = arith.constant dense<0.000000e+00> : vector<16x256xf32>
    %3 = tpu.matmul %0, %2, %cst {dimension_numbers = #tpu.dot_dimension_numbers<[1], [0], [0], [1], [0, 0, 1, 1], [], []>} : vector<16x4xf32>, vector<4x256xf32>, vector<16x256xf32> -> vector<16x256xf32>
    %cst_4 = arith.constant dense<0.000000e+00> : vector<16xf32>
    %4 = vector.multi_reduction <add>, %3, %cst_4 [1] : vector<16x256xf32> to vector<16xf32>
    %5 = vector.shape_cast %4 : vector<16xf32> to vector<16x1xf32>
    %cst_5 = arith.constant 3.906250e-03 : f32
    %6 = vector.broadcast %cst_5 : f32 to vector<16x1xf32>
    %7 = arith.mulf %5, %6 : vector<16x1xf32>
    %cst_6 = arith.constant 2.000000e+00 : f32
    %8 = vector.broadcast %cst_6 : f32 to vector<16x256xf32>
    %9 = arith.mulf %3, %8 : vector<16x256xf32>
    %cst_7 = arith.constant dense<0xFF800000> : vector<16xf32>
    %10 = vector.multi_reduction <maximumf>, %9, %cst_7 [1] : vector<16x256xf32> to vector<16xf32>
    %11 = vector.shape_cast %10 : vector<16xf32> to vector<16x1xf32>
    %12 = vector.broadcast %11 : vector<16x1xf32> to vector<16x256xf32>
    %13 = arith.subf %9, %12 : vector<16x256xf32>
    %14 = math.exp %13 : vector<16x256xf32>
    %15 = arith.mulf %3, %14 : vector<16x256xf32>
    %cst_8 = arith.constant dense<0.000000e+00> : vector<16xf32>
    %16 = vector.multi_reduction <add>, %15, %cst_8 [1] : vector<16x256xf32> to vector<16xf32>
    %17 = vector.shape_cast %16 : vector<16xf32> to vector<16x1xf32>
    %cst_9 = arith.constant dense<0.000000e+00> : vector<16xf32>
    %18 = vector.multi_reduction <add>, %14, %cst_9 [1] : vector<16x256xf32> to vector<16xf32>
    %19 = vector.shape_cast %18 : vector<16xf32> to vector<16x1xf32>
    %20 = arith.divf %17, %19 : vector<16x1xf32>
    %cst_10 = arith.constant 1.000000e-01 : f32
    %21 = vector.broadcast %cst_10 : f32 to vector<16x1xf32>
    %22 = arith.mulf %21, %20 : vector<16x1xf32>
    %23 = arith.addf %7, %22 : vector<16x1xf32>
    %c0_11 = arith.constant 0 : index
    %c0_12 = arith.constant 0 : index
    %c0_13 = arith.constant 0 : index
    %24 = vector.load %arg3[%c0_11, %c0_12, %c0_13] : memref<1x16x1xf32, #tpu.memory_space<vmem>>, vector<1x16x1xf32>
    %25 = vector.shape_cast %24 : vector<1x16x1xf32> to vector<16x1xf32>
    %26 = vector.shape_cast %23 : vector<16x1xf32> to vector<1x16x1xf32>
    tpu.vector_store %arg3[%c0_11, %c0_12, %c0_13], %26 {strides = array<i32>} : memref<1x16x1xf32, #tpu.memory_space<vmem>>, vector<1x16x1xf32>,
    return
  }
  func.func @transform_0(%arg0: i32) -> (i32, i32, i32) {
    %c0_i32 = arith.constant 0 : i32
    %c0_i32_0 = arith.constant 0 : i32
    %c0_i32_1 = arith.constant 0 : i32
    return %arg0, %c0_i32, %c0_i32_0 : i32, i32, i32
  }
  func.func @transform_1(%arg0: i32) -> (i32, i32) {
    %c0_i32 = arith.constant 0 : i32
    %c0_i32_0 = arith.constant 0 : i32
    %c0_i32_1 = arith.constant 0 : i32
    return %c0_i32, %c0_i32_0 : i32, i32
  }
  func.func @transform_2(%arg0: i32) -> (i32, i32, i32) {
    %c0_i32 = arith.constant 0 : i32
    %c0_i32_0 = arith.constant 0 : i32
    %c0_i32_1 = arith.constant 0 : i32
    return %arg0, %c0_i32, %c0_i32_0 : i32, i32, i32
  }
}

</mosaic_0001>

<llo_original>
// kernel: tpu_custom_call.1
$region0: #{tpu_custom_call.1}
  #allocation0 [shape = 'u32[]', space=smem, size = 0x4, offset = 0x4, fixed_abs, tag = 'smem constant byte address 0x4 - core index']
  #allocation1 [shape = 'u32[144,128]{1,0:T(1,128)}', space=vmem, size = 0x12000, scoped, tag = 'internal scratch']
  %s0 = inlined_call_operand.vmem [shape: f32[2,4,256], index: 0, kind: input, shape index: {}]
  %s1 = inlined_call_operand.vmem [shape: f32[16,4], index: 1, kind: input, shape index: {}]
  %s2 = inlined_call_operand.vmem [shape: f32[2,16,1], index: 2, kind: output, shape index: {}]
  %s3 = sld [smem:[#allocation0]]
  $region41: #{tpu_custom_call.1} parent=0
    _
  %s5 = ssub.s32 1, %s3
  %s6 = scalar_select 0, %s5, %s3
  loop: start=0, step=1, limit=4
  $region2: #{tpu_custom_call.1} parent=0 // loop_pre_header
    _
  $region3: #{tpu_custom_call.1} parent=0 // loop_header
    %s8 = sphi 0, %s12
    %p9 = scmp.ge.s32.totalorder %s8, 4
    %s18 = sphi 0, %s20
    %s21 = sphi 0, %s18
    %s22 = sphi 0, %s21
    %s38 = sphi 0, %s22
    %s42 = sphi 0, %s42
    %s44 = sphi 0, %s42
    %s45 = sphi 0, %s44
    %s59 = sphi 0, %s45
    %s65 = sphi 0, %s67
    %s68 = sphi 0, %s65
    %s69 = sphi 0, %s68
    %s85 = sphi 0, %s69
  $region4: #{tpu_custom_call.1} parent=0 // loop_header_branch
    %11 = sbr.rel (%p9) target = $region8
  $region5: #{tpu_custom_call.1} parent=0 // loop_body
    %s13 = ssub.s32 %s8, 1
    %s14 = ssub.s32 %s8, 2
    %s15 = sadd.s32 %s8, 1
    %s16 = ssub.s32 %s8, %s15
    %p17 = scmp.eq.s32.totalorder %s16, 0
    %s19 = sadd.s32 %s18, 1
    %s20 = scalar_select %p17, %s18, %s19
    %p23 = pneg %p17
    %p24 = scmp.eq.s32.totalorder %s8, 1
    %p25 = por %p23, %p24
    %p26 = scmp.ne.s32.totalorder %s18, %s21
    %p27 = scmp.eq.s32.totalorder %s8, 0
    %p28 = por %p26, %p27
    %p29 = scmp.ne.s32.totalorder %s18, %s21
    %p30 = scmp.eq.s32.totalorder %s13, 1
    %p31 = por %p29, %p30
    %p32 = scmp.ne.s32.totalorder %s21, %s22
    %p33 = scmp.eq.s32.totalorder %s13, 0
    %p34 = por %p32, %p33
    %p35 = scmp.ne.s32.totalorder %s21, %s22
    %p36 = scmp.eq.s32.totalorder %s14, 1
    %p37 = por %p35, %p36
    %p39 = scmp.ne.s32.totalorder %s22, %s38
    %p40 = scmp.eq.s32.totalorder %s14, 0
    %p41 = por %p39, %p40
    %s43 = sadd.s32 %s42, 1
    %p46 = scmp.eq.s32.totalorder %s8, 1
    %p47 = scmp.ne.s32.totalorder %s42, %s44
    %p48 = scmp.eq.s32.totalorder %s8, 0
    %p49 = por %p47, %p48
    %p50 = scmp.ne.s32.totalorder %s42, %s44
    %p51 = scmp.eq.s32.totalorder %s13, 1
    %p52 = por %p50, %p51
    %p53 = scmp.ne.s32.totalorder %s44, %s45
    %p54 = scmp.eq.s32.totalorder %s13, 0
    %p55 = por %p53, %p54
    %p56 = scmp.ne.s32.totalorder %s44, %s45
    %p57 = scmp.eq.s32.totalorder %s14, 1
    %p58 = por %p56, %p57
    %p60 = scmp.ne.s32.totalorder %s45, %s59
    %p61 = scmp.eq.s32.totalorder %s14, 0
    %p62 = por %p60, %p61
    %s63 = ssub.s32 %s8, %s15
    %p64 = scmp.eq.s32.totalorder %s63, 0
    %s66 = sadd.s32 %s65, 1
    %s67 = scalar_select %p64, %s65, %s66
    %p70 = pneg %p64
    %p71 = scmp.eq.s32.totalorder %s8, 1
    %p72 = por %p70, %p71
    %p73 = scmp.ne.s32.totalorder %s65, %s68
    %p74 = scmp.eq.s32.totalorder %s8, 0
    %p75 = por %p73, %p74
    %p76 = scmp.ne.s32.totalorder %s65, %s68
    %p77 = scmp.eq.s32.totalorder %s13, 1
    %p78 = por %p76, %p77
    %p79 = scmp.ne.s32.totalorder %s68, %s69
    %p80 = scmp.eq.s32.totalorder %s13, 0
    %p81 = por %p79, %p80
    %p82 = scmp.ne.s32.totalorder %s68, %s69
    %p83 = scmp.eq.s32.totalorder %s14, 1
    %p84 = por %p82, %p83
    %p86 = scmp.ne.s32.totalorder %s69, %s85
    %p87 = scmp.eq.s32.totalorder %s14, 0
    %p88 = por %p86, %p87
    %p89 = scmp.le.s32.totalorder 1, %s8
    %p90 = scmp.lt.s32.totalorder %s8, 3
    %p91 = pnand %p89, %p90
    %p92 = pneg %p91
    // Predicated region
    $region9: #{tpu_custom_call.1} parent=5 // pred_check
      _
    $region10: #{tpu_custom_call.1} parent=5 // pred_check_branch
      %94 = sbr.rel (%p91) target = $region12
    $region11: #{tpu_custom_call.1} parent=5 // pred_region
      %s95 = ssub.s32 %s8, 1
      // Predicated region
      $region13: #{tpu_custom_call.1} parent=11 // pred_check
        %p96 = pneg %p55
      $region14: #{tpu_custom_call.1} parent=11 // pred_check_branch
        %98 = sbr.rel (%p96) target = $region16
      $region15: #{tpu_custom_call.1} parent=11 // pred_region
        _
      $region16: #{tpu_custom_call.1} parent=11 // pred_fallthru
        _
    $region12: #{tpu_custom_call.1} parent=5 // pred_fallthru
      _
    %p99 = scmp.lt.s32.totalorder %s8, 2
    // Predicated region
    $region17: #{tpu_custom_call.1} parent=5 // pred_check
      %p100 = pneg %p99
    $region18: #{tpu_custom_call.1} parent=5 // pred_check_branch
      %102 = sbr.rel (%p100) target = $region20
    $region19: #{tpu_custom_call.1} parent=5 // pred_region
      // Predicated region
      $region21: #{tpu_custom_call.1} parent=19 // pred_check
        %p103 = pneg %p28
      $region22: #{tpu_custom_call.1} parent=19 // pred_check_branch
        %105 = sbr.rel (%p103) target = $region24
      $region23: #{tpu_custom_call.1} parent=19 // pred_region
        %p106 = scmp.lt.s32.totalorder %s8, 1
        %s107 = scalar_select %p106, %s8, 1
        %s108 = smul.addr %s107, 2
        %s109 = smul.addr %s108, 4
        %s110 = scalar_lea.vmem %s0, %s109
      $region24: #{tpu_custom_call.1} parent=19 // pred_fallthru
        _
    $region20: #{tpu_custom_call.1} parent=5 // pred_fallthru
      _
    %p111 = scmp.le.s32.totalorder 1, %s8
    %p112 = scmp.lt.s32.totalorder %s8, 3
    %p113 = pnand %p111, %p112
    %p114 = pneg %p113
    // Predicated region
    $region25: #{tpu_custom_call.1} parent=5 // pred_check
      _
    $region26: #{tpu_custom_call.1} parent=5 // pred_check_branch
      %116 = sbr.rel (%p113) target = $region28
    $region27: #{tpu_custom_call.1} parent=5 // pred_region
      %s117 = ssub.s32 %s8, 1
      %p118 = scmp.lt.s32.totalorder %s13, 1
      %s119 = scalar_select %p118, %s13, 1
      %s120 = smul.addr %s119, 2
      %s121 = smul.addr %s120, 4
      %s122 = scalar_lea.vmem %s0, %s121
      %p123 = pneg %p34
      %p124 = pneg %p31
      %p125 = pneg %p55
      %p126 = pneg %p52
      %p127 = pneg %p81
      %p128 = pneg %p78
      %p129 = scmp.lt.s32.totalorder %s13, 1
      %s130 = scalar_select %p129, %s13, 1
      %s131 = smul.addr %s130, 2
      %s132 = smul.addr %s131, 8
      %s133 = scalar_lea.vmem %s2, %s132
      %p134 = scmp.lt.s32.totalorder %s13, 1
      %s135 = scalar_select %p134, %s13, 1
      %s136 = smul.addr %s135, 2
      %s137 = smul.addr %s136, 4
      %s138 = scalar_lea.vmem %s0, %s137
      %p139 = scmp.lt.s32.totalorder %s13, 1
      %s140 = scalar_select %p139, %s13, 1
      %s141 = smul.addr %s140, 2
      %s142 = smul.addr %s141, 8
      %s143 = scalar_lea.vmem %s2, %s142
      %v144 = vld [vmem:[%s1] sm:$0xff]
      %v145 = vld [vmem:[%s1 + $0x8] sm:$0xff]
      %v146 = vld [vmem:[%s138] sm:$0xff]
      %v148 = vcombine.high %v146, %v146
      %vm149 = vcmask 31744
      %v151 = vsel %vm149, %v144, 0
      %v154 = vsel %vm149, %v145, 0
      %vm156 = vcmask 1043456
      %v157 = vsel %vm156, %v146, 0
      %v159 = vsel %vm156, %v148, 0
      %161 = vmatprep.subr.mxu0 %v159
      %162 = vmatpush1.msra.mxu0 %v157
      %163 = vmatprep.subr.mxu0 0.0
      %164 = vmatpush1.msra.mxu0 0.0
      %165 = vmatprep.subr.mxu0 0.0
      %166 = vmatpush1.msra.mxu0 0.0
      %167 = vmatprep.subr.mxu0 0.0
      %168 = vmatpush1.msra.mxu0 0.0
      %169 = vmatprep.subr.mxu0 0.0
      %170 = vmatpush1.msra.mxu0 0.0
      %171 = vmatprep.subr.mxu0 0.0
      %172 = vmatpush1.msra.mxu0 0.0
      %173 = vmatprep.subr.mxu0 0.0
      %174 = vmatpush1.msra.mxu0 0.0
      %175 = vmatprep.subr.mxu0 0.0
      %176 = vmatpush1.msra.mxu0 0.0
      %177 = vmatprep.subr.mxu0 0.0
      %178 = vmatpush1.msra.mxu0 0.0
      %179 = vmatprep.subr.mxu0 0.0
      %180 = vmatpush1.msra.mxu0 0.0
      %181 = vmatprep.subr.mxu0 0.0
      %182 = vmatpush1.msra.mxu0 0.0
      %183 = vmatprep.subr.mxu0 0.0
      %184 = vmatpush1.msra.mxu0 0.0
      %185 = vmatprep.subr.mxu0 0.0
      %186 = vmatpush1.msra.mxu0 0.0
      %187 = vmatprep.subr.mxu0 0.0
      %188 = vmatpush1.msra.mxu0 0.0
      %189 = vmatprep.subr.mxu0 0.0
      %190 = vmatpush1.msra.mxu0 0.0
      %191 = vmatprep.subr.mxu0 0.0
      %192 = vmatpush1.msra.mxu0 0.0
      %193 = vmatprep.subr.mxu0 0.0
      %194 = vmatpush1.msra.mxu0 0.0
      %195 = vmatprep.subr.mxu0 0.0
      %196 = vmatpush1.msra.mxu0 0.0
      %197 = vmatprep.subr.mxu0 0.0
      %198 = vmatpush1.msra.mxu0 0.0
      %199 = vmatprep.subr.mxu0 0.0
      %200 = vmatpush1.msra.mxu0 0.0
      %201 = vmatprep.subr.mxu0 0.0
      %202 = vmatpush1.msra.mxu0 0.0
      %203 = vmatprep.subr.mxu0 0.0
      %204 = vmatpush1.msra.mxu0 0.0
      %205 = vmatprep.subr.mxu0 0.0
      %206 = vmatpush1.msra.mxu0 0.0
      %207 = vmatprep.subr.mxu0 0.0
      %208 = vmatpush1.msra.mxu0 0.0
      %209 = vmatprep.subr.mxu0 0.0
      %210 = vmatpush1.msra.mxu0 0.0
      %211 = vmatprep.subr.mxu0 0.0
      %212 = vmatpush1.msra.mxu0 0.0
      %213 = vmatprep.subr.mxu0 0.0
      %214 = vmatpush1.msra.mxu0 0.0
      %215 = vmatprep.subr.mxu0 0.0
      %216 = vmatpush1.msra.mxu0 0.0
      %217 = vmatprep.subr.mxu0 0.0
      %218 = vmatpush1.msra.mxu0 0.0
      %219 = vmatprep.subr.mxu0 0.0
      %220 = vmatpush1.msra.mxu0 0.0
      %221 = vmatprep.subr.mxu0 0.0
      %222 = vmatpush1.msra.mxu0 0.0
      %223 = vmatprep.subr.mxu0 0.0
      %224 = vmatpush1.msra.mxu0 0.0
      %225 = vmatprep.mubr.f32.mxu0 0.0
      %226 = vmatmul.mubr.f32.gmra.mrb[0].mxu0 %v151
      %v227 = vpop.f32.mrb[0].mxu0
      %v228 = vadd.f32 0.0, %v227
      %v229 = vpop.f32.mrb[0].mxu0
      %v230 = vadd.f32 0.0, %v229
      %231 = vmatprep.mubr.f32.mxu0 0.0
      %232 = vmatmul.mubr.f32.gmra.mrb[0].mxu0 %v154
      %v233 = vpop.f32.mrb[0].mxu0
      %v234 = vadd.f32 0.0, %v233
      %v235 = vpop.f32.mrb[0].mxu0
      %v236 = vadd.f32 0.0, %v235
      %237 = vdwg.mxu0
      %v238 = vadd.f32 %v228, %v230
      %239 = vadd.xlane.f32.xlu0 %v238
      %v240 = vpop.xlane.xlu0 %239
      %v241 = vadd.f32 %v234, %v236
      %242 = vadd.xlane.f32.xlu0 %v241
      %v243 = vpop.xlane.xlu0 %242
      %v244 = vmul.f32 %v240, 0.00390625
      %v245 = vmul.f32 %v243, 0.00390625
      %v246 = vmul.f32 %v228, 2.0
      %v247 = vmul.f32 %v230, 2.0
      %v248 = vmul.f32 %v234, 2.0
      %v249 = vmul.f32 %v236, 2.0
      %v250 = vmax.f32 %v246, %v247
      %251 = vmax.xlane.f32.xlu0 %v250
      %v252 = vpop.xlane.xlu0 %251
      %v253 = vmax.f32 %v248, %v249
      %254 = vmax.xlane.f32.xlu0 %v253
      %v255 = vpop.xlane.xlu0 %254
      %v256 = vsub.f32 %v246, %v252
      %v257 = vsub.f32 %v247, %v252
      %v258 = vsub.f32 %v248, %v255
      %v259 = vsub.f32 %v249, %v255
      %v260 = vmul.f32 %v256, 1.442695
      %v261 = vpow.pop %v260
      %v262 = vmul.f32 %v257, 1.442695
      %v263 = vpow.pop %v262
      %v264 = vmul.f32 %v258, 1.442695
      %v265 = vpow.pop %v264
      %v266 = vmul.f32 %v259, 1.442695
      %v267 = vpow.pop %v266
      %v268 = vmul.f32 %v228, %v261
      %v269 = vmul.f32 %v230, %v263
      %v270 = vmul.f32 %v234, %v265
      %v271 = vmul.f32 %v236, %v267
      %v272 = vadd.f32 %v268, %v269
      %273 = vadd.xlane.f32.xlu0 %v272
      %v274 = vpop.xlane.xlu0 %273
      %v275 = vadd.f32 %v270, %v271
      %276 = vadd.xlane.f32.xlu0 %v275
      %v277 = vpop.xlane.xlu0 %276
      %v278 = vadd.f32 %v261, %v263
      %279 = vadd.xlane.f32.xlu0 %v278
      %v280 = vpop.xlane.xlu0 %279
      %v281 = vadd.f32 %v265, %v267
      %282 = vadd.xlane.f32.xlu0 %v281
      %v283 = vpop.xlane.xlu0 %282
      %v284 = vrcp.pop %v280
      %v285 = vmul.f32 %v274, %v284
      %v286 = vrcp.pop %v283
      %v287 = vmul.f32 %v277, %v286
      %v288 = vmul.f32 %v285, 0.1
      %v289 = vmul.f32 %v287, 0.1
      %v290 = vadd.f32 %v244, %v288
      %v291 = vadd.f32 %v245, %v289
      %vm292 = vcmask 7168
      %293 = vst.msk [vmem:[%s143] sm:$0xff] %vm292, %v290
      %294 = vst.msk [vmem:[%s143 + $0x8] sm:$0xff] %vm292, %v291
      %p295 = scmp.lt.s32.totalorder %s13, 1
      %s296 = scalar_select %p295, %s13, 1
      %s297 = smul.addr %s296, 2
      %s298 = smul.addr %s297, 8
      %s299 = scalar_lea.vmem %s2, %s298
      // Predicated region
      $region29: #{tpu_custom_call.1} parent=27 // pred_check
        %p300 = pneg %p78
      $region30: #{tpu_custom_call.1} parent=27 // pred_check_branch
        %302 = sbr.rel (%p300) target = $region32
      $region31: #{tpu_custom_call.1} parent=27 // pred_region
        _
      $region32: #{tpu_custom_call.1} parent=27 // pred_fallthru
        _
    $region28: #{tpu_custom_call.1} parent=5 // pred_fallthru
      _
    %p303 = scmp.le.s32.totalorder 2, %s8
    // Predicated region
    $region33: #{tpu_custom_call.1} parent=5 // pred_check
      %p304 = pneg %p303
    $region34: #{tpu_custom_call.1} parent=5 // pred_check_branch
      %306 = sbr.rel (%p304) target = $region36
    $region35: #{tpu_custom_call.1} parent=5 // pred_region
      %s307 = ssub.s32 %s8, 2
      // Predicated region
      $region37: #{tpu_custom_call.1} parent=35 // pred_check
        %p308 = pneg %p84
      $region38: #{tpu_custom_call.1} parent=35 // pred_check_branch
        %310 = sbr.rel (%p308) target = $region40
      $region39: #{tpu_custom_call.1} parent=35 // pred_region
        %p311 = scmp.lt.s32.totalorder %s14, 1
        %s312 = scalar_select %p311, %s14, 1
        %s313 = smul.addr %s312, 2
        %s314 = smul.addr %s313, 8
        %s315 = scalar_lea.vmem %s2, %s314
      $region40: #{tpu_custom_call.1} parent=35 // pred_fallthru
        _
    $region36: #{tpu_custom_call.1} parent=5 // pred_fallthru
      _
  $region6: #{tpu_custom_call.1} parent=0 // loop_footer
    %s12 = sadd.s32 1, %s8
  $region7: #{tpu_custom_call.1} parent=0 // loop_footer_branch
    %7 = sbr.rel target = $region3
  $region8: #{tpu_custom_call.1} parent=0 // loop_exit
    _

</llo_original>
